<compile_context>
chip_gen: v7x
topology: tpu7x:2x2x1
jax: 0.10.0
libtpu: 0.0.40
codegen_flags: <defaults>
</compile_context>

<pallas_src>
import functools
import math

import jax
import jax.numpy as jnp
import numpy as np
from jax.experimental import pallas as pl
from jax.experimental.pallas import tpu as pltpu


# --------------------------------------------------------------------------
# helpers
# --------------------------------------------------------------------------

def _round_up(x: int, m: int) -> int:
    return (x + m - 1) // m * m


@functools.lru_cache(maxsize=None)
def _vmem_capacity_bytes() -> int:
    """Per-core VMEM capacity (chip-aware), with a conservative fallback."""
    try:
        info = pltpu.get_tpu_info()
        cap = int(getattr(info, "vmem_capacity_bytes", 0) or 0)
        if cap > 0:
            return cap
    except Exception:
        pass
    return 64 * 1024 * 1024       # v7x per-TensorCore VMEM (most restrictive)


def _bilinear_matrix(in_size: int, out_size: int) -> np.ndarray:
    """1-D bilinear interpolation matrix, PyTorch align_corners=False rule."""
    out = np.arange(out_size, dtype=np.float64)
    scale = in_size / out_size
    src = (out + 0.5) * scale - 0.5
    src = np.maximum(src, 0.0)                       # linear modes clamp negatives
    i0 = np.minimum(np.floor(src).astype(np.int64), in_size - 1)
    i1 = np.minimum(i0 + 1, in_size - 1)
    w1 = src - i0
    w0 = 1.0 - w1
    mat = np.zeros((out_size, in_size), dtype=np.float64)
    mat[np.arange(out_size), i0] += w0
    mat[np.arange(out_size), i1] += w1
    return mat


@functools.lru_cache(maxsize=None)
def _fused_weights(h_in, w_in, h_out, w_out, dtype):
    """Cached device array K = kron(L_h, L_w)^T : (H_in*W_in, H_out*W_out)."""
    lh = _bilinear_matrix(h_in, h_out)
    lw = _bilinear_matrix(w_in, w_out)
    return jnp.asarray(np.kron(lh, lw).T, dtype=dtype)


@functools.lru_cache(maxsize=None)
def _separable_weights(h_in, w_in, h_out, w_out, dtype):
    """Cached device arrays (L_w^T : (W_in, W_out), L_h : (H_out, H_in))."""
    lh = _bilinear_matrix(h_in, h_out)
    lw = _bilinear_matrix(w_in, w_out)
    return jnp.asarray(lw.T, dtype=dtype), jnp.asarray(lh, dtype=dtype)


def _pick_row_blk(nc, per_plane_bytes, avail_bytes, max_cap):
    """Planes per grid step: VMEM-sized, >=2 grid steps when possible."""
    if nc <= 8:
        return nc                                     # single full-extent block
    avail = max(int(avail_bytes), 1 << 20)
    vmem_rows = max(8, (avail // max(per_plane_bytes, 1)) // 8 * 8)
    half = _round_up((nc + 1) // 2, 8)                # v7x: keep both TCs busy
    return int(max(8, min(vmem_rows, half, max_cap)))


def _vmem_limit(need_bytes):
    cap = _vmem_capacity_bytes()
    return int(min(max(int(need_bytes), 32 << 20), int(cap * 0.9)))


# --------------------------------------------------------------------------
# kernels
# --------------------------------------------------------------------------

def _upsample_kron_kernel(x_ref, k_ref, o_ref):
    """Fused path: one lane-dense MXU matmul per channel-blocked slab.

    x_ref: (row_blk, H_in*W_in)   k_ref: (H_in*W_in, H_out*W_out)
    o_ref: (row_blk, H_out*W_out) -- last dim lane-dense (multiple of 128 or full)
    """
    x = x_ref[...]
    if x.dtype != k_ref.dtype:                        # static (trace-time) branch
        x = x.astype(k_ref.dtype)
    o_ref[...] = jnp.dot(x, k_ref[...],
                         preferred_element_type=jnp.float32).astype(o_ref.dtype)


def _make_separable_kernel(row_blk, h_in, w_in, h_out, w_out):
    """Separable two-pass path for maps where the kron form is compute-bound."""

    def kernel(x_ref, lwt_ref, lh_ref, o_ref):
        # x_ref  : (row_blk*H_in, W_in)   flattened plane rows
        # lwt_ref: (W_in, W_out)          L_w^T (pre-transposed on host)
        # lh_ref : (H_out, H_in)          L_h
        # o_ref  : (row_blk, H_out, W_out)
        x = x_ref[...]
        if x.dtype != lwt_ref.dtype:                  # static branch
            x = x.astype(lwt_ref.dtype)
        # W pass: one big MXU matmul over every row of every plane in the slab.
        t = jnp.dot(x, lwt_ref[...], preferred_element_type=jnp.float32)
        t3 = t.reshape(row_blk, h_in, w_out)          # major-dim split (h_in % 8 == 0)
        # H pass: single batched contraction with the plane axis as the batch
        # dim (same dot_general pattern as 'bqk,bkd->bqd' in flash attention);
        # L_h is broadcast/hoisted once per block, no per-plane fori_loop or
        # per-plane dynamic stores.
        lh = jnp.broadcast_to(lh_ref[...].astype(jnp.float32),
                              (row_blk, h_out, h_in))
        o3 = jnp.einsum("bph,bhq->bpq", lh, t3,
                        preferred_element_type=jnp.float32)
        o_ref[...] = o3.astype(o_ref.dtype)

    return kernel


# --------------------------------------------------------------------------
# wrapper
# --------------------------------------------------------------------------

def upsample_block(x: jnp.ndarray, scale_factor=(2, 2)) -> jnp.ndarray:
    """Forward pass of UpSampleBlock (bilinear upsample, p=0.0) on NCHW input."""
    if not isinstance(scale_factor, (tuple, list)):
        scale_factor = (scale_factor, scale_factor)
    n, c, h_in, w_in = x.shape
    h_out = int(math.floor(h_in * scale_factor[0]))
    w_out = int(math.floor(w_in * scale_factor[1]))
    nc = n * c
    p_in = h_in * w_in
    q_out = h_out * w_out
    itemsize = x.dtype.itemsize

    compute_dtype = jnp.bfloat16 if x.dtype == jnp.bfloat16 else jnp.float32
    cd_size = 2 if compute_dtype == jnp.bfloat16 else 4

    # Roofline/dtype-aware path switch: fused kron matmul only while it stays
    # memory-bound (its FLOPs are ~h_in*w_in / (w_out+h_out) times the
    # separable form's).  The separable kernel also needs h_in % 8 == 0 for a
    # cheap layout-compatible reshape, otherwise stay on the fused path.
    fused_threshold = 256 if compute_dtype == jnp.bfloat16 else 128
    use_fused = (p_in <= fused_threshold) or (h_in % 8 != 0)

    budget = int(_vmem_capacity_bytes() * 0.70)

    if use_fused:
        # ---- fused path: out2d = x2d @ kron(L_h, L_w)^T ----
        k_mat = _fused_weights(h_in, w_in, h_out, w_out, compute_dtype)
        k_bytes = p_in * q_out * cd_size
        # VMEM per plane: double-buffered in/out blocks + f32 result before cast.
        per_plane = 2 * (p_in + q_out) * itemsize + q_out * 4
        row_blk = _pick_row_blk(nc, per_plane, budget - 2 * k_bytes, max_cap=4096)
        num_blocks = pl.cdiv(nc, row_blk)             # no padding: clamp last block

        x2d = x.reshape(nc, p_in)
        cost = pl.CostEstimate(
            flops=int(2 * nc * p_in * q_out),
            transcendentals=0,
            bytes_accessed=int(nc * (p_in + q_out) * itemsize + k_bytes))

        out2d = pl.pallas_call(
            _upsample_kron_kernel,
            out_shape=jax.ShapeDtypeStruct((nc, q_out), x.dtype),
            grid=(num_blocks,),
            in_specs=[
                pl.BlockSpec((row_blk, p_in), lambda i: (i, 0)),
                # constant index_map: DMA'd to VMEM once, reused every step
                pl.BlockSpec((p_in, q_out), lambda i: (0, 0)),
            ],
            out_specs=pl.BlockSpec((row_blk, q_out), lambda i: (i, 0)),
            compiler_params=pltpu.CompilerParams(
                dimension_semantics=("parallel",),
                vmem_limit_bytes=_vmem_limit(
                    2 * k_bytes + row_blk * per_plane + (4 << 20))),
            cost_estimate=cost,
        )(x2d, k_mat)
        return out2d.reshape(n, c, h_out, w_out)

    # ---- separable path: flat W-pass matmul + batched H-pass contraction ----
    lwt, lh = _separable_weights(h_in, w_in, h_out, w_out, compute_dtype)
    weights_bytes = 2 * (lwt.size + lh.size) * cd_size
    per_plane = (2 * (p_in + q_out) * itemsize        # double-buffered in/out blocks
                 + h_in * w_out * 4                   # f32 W-pass intermediate
                 + h_out * h_in * 4                   # broadcast L_h
                 + q_out * 4)                         # f32 H-pass result before cast
    row_blk = _pick_row_blk(nc, per_plane, budget - weights_bytes, max_cap=1024)
    num_blocks = pl.cdiv(nc, row_blk)                 # no padding: clamp last block

    x2 = x.reshape(nc * h_in, w_in)                   # free reshape, no HBM copy
    kernel = _make_separable_kernel(row_blk, h_in, w_in, h_out, w_out)
    cost = pl.CostEstimate(
        flops=int(2 * nc * h_in * w_in * w_out + 2 * nc * h_in * w_out * h_out),
        transcendentals=0,
        bytes_accessed=int(nc * (p_in + q_out) * itemsize + weights_bytes))

    # TODO(synk): the H-pass result is stored as (row_blk, H_out, W_out); a
    # lane-dense (H_out*W_out)-wide store would need an in-register minor-dim
    # merge whose lowering support is shape-dependent, so it is not done here.
    out3 = pl.pallas_call(
        kernel,
        out_shape=jax.ShapeDtypeStruct((nc, h_out, w_out), x.dtype),
        grid=(num_blocks,),
        in_specs=[
            pl.BlockSpec((row_blk * h_in, w_in), lambda i: (i, 0)),
            pl.BlockSpec((w_in, w_out), lambda i: (0, 0)),
            pl.BlockSpec((h_out, h_in), lambda i: (0, 0)),
        ],
        out_specs=pl.BlockSpec((row_blk, h_out, w_out), lambda i: (i, 0, 0)),
        compiler_params=pltpu.CompilerParams(
            dimension_semantics=("parallel",),
            vmem_limit_bytes=_vmem_limit(
                row_blk * per_plane + weights_bytes + (4 << 20))),
        cost_estimate=cost,
    )(x2, lwt, lh)
    return out3.reshape(n, c, h_out, w_out)


# --------------------------------------------------------------------------
# reference + self-test
# --------------------------------------------------------------------------

def _reference_upsample(x: jnp.ndarray, scale=(2, 2)) -> np.ndarray:
    """Host float64 reference (PyTorch align_corners=False semantics)."""
    n, c, h, w = x.shape
    lh = _bilinear_matrix(h, int(h * scale[0]))
    lw = _bilinear_matrix(w, int(w * scale[1]))
    xf = np.asarray(x).astype(np.float64)
    return np.einsum("ph,nchw,qw->ncpq", lh, xf, lw)


if __name__ == "__main__":
    # (2, 4, 16, 16) f32 -> separable path (kron form would be compute-bound).
    x = jax.random.normal(jax.random.PRNGKey(0), (2, 4, 16, 16), dtype=jnp.float32)
    out = jax.block_until_ready(upsample_block(x))
    assert out.shape == (2, 4, 32, 32), out.shape
    np.testing.assert_allclose(np.asarray(out, np.float64), _reference_upsample(x),
                               rtol=1e-2, atol=1e-2)   # covers any MXU f32 strategy

    # (1, 3, 8, 8) f32 -> fused kron path, nc=3 (< 8: full-extent block, no pad).
    x2 = jax.random.normal(jax.random.PRNGKey(1), (1, 3, 8, 8), dtype=jnp.float32)
    out2 = jax.block_until_ready(upsample_block(x2))
    assert out2.shape == (1, 3, 16, 16), out2.shape
    np.testing.assert_allclose(np.asarray(out2, np.float64), _reference_upsample(x2),
                               rtol=1e-2, atol=1e-2)

    # (3, 4, 8, 8) f32 -> fused path, nc=12: 2 grid steps + clamped partial block.
    x3 = jax.random.normal(jax.random.PRNGKey(2), (3, 4, 8, 8), dtype=jnp.float32)
    out3 = jax.block_until_ready(upsample_block(x3))
    assert out3.shape == (3, 4, 16, 16), out3.shape
    np.testing.assert_allclose(np.asarray(out3, np.float64), _reference_upsample(x3),
                               rtol=1e-2, atol=1e-2)

    # (2, 4, 16, 16) bf16 -> fused bf16 path (K is exactly representable in bf16).
    xb = jax.random.normal(jax.random.PRNGKey(3), (2, 4, 16, 16), dtype=jnp.bfloat16)
    outb = jax.block_until_ready(upsample_block(xb))
    assert outb.shape == (2, 4, 32, 32), outb.shape
    np.testing.assert_allclose(np.asarray(outb).astype(np.float64),
                               _reference_upsample(xb), rtol=3e-2, atol=3e-2)

    print("KERNEL_OK")
</pallas_src>

<mosaic_0001>
module attributes {stable_mosaic.version = 11 : i64} {
  func.func @kernel(%arg0: i32, %arg1: memref<128x16xf32, #tpu.memory_space<vmem>>, %arg2: memref<16x32xf32, #tpu.memory_space<vmem>>, %arg3: memref<32x16xf32, #tpu.memory_space<vmem>>, %arg4: memref<8x32x32xf32, #tpu.memory_space<vmem>>) attributes {dimension_semantics = [#tpu.dimension_semantics<parallel>], iteration_bounds = array<i64: 1>, scalar_prefetch = 0 : i64, scratch_operands = 0 : i64, tpu.core_type = #tpu.core_type<tc>, window_params = [{transform_indices = @transform_0, window_bounds = array<i64: 128, 16>}, {pipeline_mode = #tpu.pipeline_mode<synchronous>, transform_indices = @transform_1, window_bounds = array<i64: 16, 32>}, {pipeline_mode = #tpu.pipeline_mode<synchronous>, transform_indices = @transform_2, window_bounds = array<i64: 32, 16>}, {transform_indices = @transform_3, window_bounds = array<i64: 8, 32, 32>}]} {
    %c0 = arith.constant 0 : index
    %c0_0 = arith.constant 0 : index
    %0 = vector.load %arg1[%c0, %c0_0] : memref<128x16xf32, #tpu.memory_space<vmem>>, vector<128x16xf32>
    %c0_1 = arith.constant 0 : index
    %c0_2 = arith.constant 0 : index
    %1 = vector.load %arg2[%c0_1, %c0_2] : memref<16x32xf32, #tpu.memory_space<vmem>>, vector<16x32xf32>
    %cst = arith.constant dense<0.000000e+00> : vector<128x32xf32>
    %2 = tpu.matmul %0, %1, %cst {dimension_numbers = #tpu.dot_dimension_numbers<[1], [0], [0], [1], [0, 0, 1, 1], [], []>} : vector<128x16xf32>, vector<16x32xf32>, vector<128x32xf32> -> vector<128x32xf32>
    %3 = vector.shape_cast %2 : vector<128x32xf32> to vector<8x16x32xf32>
    %c0_3 = arith.constant 0 : index
    %c0_4 = arith.constant 0 : index
    %4 = vector.load %arg3[%c0_3, %c0_4] : memref<32x16xf32, #tpu.memory_space<vmem>>, vector<32x16xf32>
    %5 = vector.shape_cast %4 : vector<32x16xf32> to vector<1x32x16xf32>
    %6 = vector.broadcast %5 : vector<1x32x16xf32> to vector<8x32x16xf32>
    "tpu.trace_start"() <{level = 10 : i32, message = "bph,bhq->bpq"}> : () -> ()
    %cst_5 = arith.constant dense<0.000000e+00> : vector<8x32x32xf32>
    %7 = tpu.matmul %6, %3, %cst_5 {dimension_numbers = #tpu.dot_dimension_numbers<[2], [1], [1], [2], [0, 0, 0, 1, 1, 2], [0], [0]>} : vector<8x32x16xf32>, vector<8x16x32xf32>, vector<8x32x32xf32> -> vector<8x32x32xf32>
    "tpu.trace_stop"() : () -> ()
    %c0_6 = arith.constant 0 : index
    %c0_7 = arith.constant 0 : index
    %c0_8 = arith.constant 0 : index
    %8 = vector.load %arg4[%c0_6, %c0_7, %c0_8] : memref<8x32x32xf32, #tpu.memory_space<vmem>>, vector<8x32x32xf32>
    tpu.vector_store %arg4[%c0_6, %c0_7, %c0_8], %7 {strides = array<i32>} : memref<8x32x32xf32, #tpu.memory_space<vmem>>, vector<8x32x32xf32>,
    return
  }
  func.func @transform_0(%arg0: i32) -> (i32, i32) {
    %c0_i32 = arith.constant 0 : i32
    %c0_i32_0 = arith.constant 0 : i32
    return %arg0, %c0_i32 : i32, i32
  }
  func.func @transform_1(%arg0: i32) -> (i32, i32) {
    %c0_i32 = arith.constant 0 : i32
    %c0_i32_0 = arith.constant 0 : i32
    %c0_i32_1 = arith.constant 0 : i32
    return %c0_i32, %c0_i32_0 : i32, i32
  }
  func.func @transform_2(%arg0: i32) -> (i32, i32) {
    %c0_i32 = arith.constant 0 : i32
    %c0_i32_0 = arith.constant 0 : i32
    %c0_i32_1 = arith.constant 0 : i32
    return %c0_i32, %c0_i32_0 : i32, i32
  }
  func.func @transform_3(%arg0: i32) -> (i32, i32, i32) {
    %c0_i32 = arith.constant 0 : i32
    %c0_i32_0 = arith.constant 0 : i32
    %c0_i32_1 = arith.constant 0 : i32
    return %arg0, %c0_i32, %c0_i32_0 : i32, i32, i32
  }
}

</mosaic_0001>

<llo_original>
// kernel: tpu_custom_call.1
$region0: #{tpu_custom_call.1}
  #allocation0 [shape = 'u32[]', space=smem, size = 0x4, offset = 0x4, fixed_abs, tag = 'smem constant byte address 0x4 - core index']
  #allocation1 [shape = 'u32[144,128]{1,0:T(1,128)}', space=vmem, size = 0x12000, scoped, tag = 'internal scratch']
  %s0 = inlined_call_operand.vmem [shape: f32[128,16], index: 0, kind: input, shape index: {}]
  %s1 = inlined_call_operand.vmem [shape: f32[16,32], index: 1, kind: input, shape index: {}]
  %s2 = inlined_call_operand.vmem [shape: f32[32,16], index: 2, kind: input, shape index: {}]
  %s3 = inlined_call_operand.hbm [shape: f32[8,32,32], index: 3, kind: output, shape index: {}]
  %s4 = sld [smem:[#allocation0]]
  $region22: #{tpu_custom_call.1} parent=0
    _
  %s6 = ssub.s32 1, %s4
  %s7 = scalar_select 0, %s6, %s4
  $region1: #{tpu_custom_call.1} parent=0
    #allocation2 [shape = 'u8[131072]{0}', space=vmem, size = 0x20000, scoped, tag = 'output window, operand 0, single buffered']
    #allocation3 [shape = 's32[1]{0}', space=sflag, size = 0x4, scoped, tag = 'scoped memory for tpu_custom_call.1']
    %8 = vsyncpa [#allocation3], 0
    // Predicated region
    $region2: #{tpu_custom_call.1} parent=1 // pred_check
      _
    $region3: #{tpu_custom_call.1} parent=1 // pred_check_branch
      %10 = sbr.rel (0) target = $region5
    $region4: #{tpu_custom_call.1} parent=1 // pred_region
      _
    $region5: #{tpu_custom_call.1} parent=1 // pred_fallthru
      _
    // Predicated region
    $region6: #{tpu_custom_call.1} parent=1 // pred_check
      _
    $region7: #{tpu_custom_call.1} parent=1 // pred_check_branch
      %12 = sbr.rel (0) target = $region9
    $region8: #{tpu_custom_call.1} parent=1 // pred_region
      _
    $region9: #{tpu_custom_call.1} parent=1 // pred_fallthru
      _
    // Predicated region
    $region10: #{tpu_custom_call.1} parent=1 // pred_check
      _
    $region11: #{tpu_custom_call.1} parent=1 // pred_check_branch
      %14 = sbr.rel (0) target = $region13
    $region12: #{tpu_custom_call.1} parent=1 // pred_region
      _
    $region13: #{tpu_custom_call.1} parent=1 // pred_fallthru
      _
    %v15 = vld [vmem:[%s0] sm:$0xff]
    %v16 = vld [vmem:[%s0 + $0x8] sm:$0xff]
    %v17 = vld [vmem:[%s0 + $0x10] sm:$0xff]
    %v18 = vld [vmem:[%s0 + $0x18] sm:$0xff]
    %v19 = vld [vmem:[%s0 + $0x20] sm:$0xff]
    %v20 = vld [vmem:[%s0 + $0x28] sm:$0xff]
    %v21 = vld [vmem:[%s0 + $0x30] sm:$0xff]
    %v22 = vld [vmem:[%s0 + $0x38] sm:$0xff]
    %v23 = vld [vmem:[%s0 + $0x40] sm:$0xff]
    %v24 = vld [vmem:[%s0 + $0x48] sm:$0xff]
    %v25 = vld [vmem:[%s0 + $0x50] sm:$0xff]
    %v26 = vld [vmem:[%s0 + $0x58] sm:$0xff]
    %v27 = vld [vmem:[%s0 + $0x60] sm:$0xff]
    %v28 = vld [vmem:[%s0 + $0x68] sm:$0xff]
    %v29 = vld [vmem:[%s0 + $0x70] sm:$0xff]
    %v30 = vld [vmem:[%s0 + $0x78] sm:$0xff]
    %v31 = vld [vmem:[%s1] sm:$0xff]
    %v32 = vld [vmem:[%s1 + $0x8] sm:$0xff]
    %vm33 = vcmask 130048
    %v35 = vsel %vm33, %v15, 0
    %v38 = vsel %vm33, %v16, 0
    %v41 = vsel %vm33, %v17, 0
    %v44 = vsel %vm33, %v18, 0
    %v47 = vsel %vm33, %v19, 0
    %v50 = vsel %vm33, %v20, 0
    %v53 = vsel %vm33, %v21, 0
    %v56 = vsel %vm33, %v22, 0
    %v59 = vsel %vm33, %v23, 0
    %v62 = vsel %vm33, %v24, 0
    %v65 = vsel %vm33, %v25, 0
    %v68 = vsel %vm33, %v26, 0
    %v71 = vsel %vm33, %v27, 0
    %v74 = vsel %vm33, %v28, 0
    %v77 = vsel %vm33, %v29, 0
    %v80 = vsel %vm33, %v30, 0
    %82 = vmatprep.subr.mxu0 0.0
    %83 = vmatpush1.msra.mxu0 %v31
    %84 = vmatprep.subr.mxu0 0.0
    %85 = vmatpush1.msra.mxu0 %v32
    %86 = vmatprep.subr.mxu0 0.0
    %87 = vmatpush1.msra.mxu0 0.0
    %88 = vmatprep.subr.mxu0 0.0
    %89 = vmatpush1.msra.mxu0 0.0
    %90 = vmatprep.subr.mxu0 0.0
    %91 = vmatpush1.msra.mxu0 0.0
    %92 = vmatprep.subr.mxu0 0.0
    %93 = vmatpush1.msra.mxu0 0.0
    %94 = vmatprep.subr.mxu0 0.0
    %95 = vmatpush1.msra.mxu0 0.0
    %96 = vmatprep.subr.mxu0 0.0
    %97 = vmatpush1.msra.mxu0 0.0
    %98 = vmatprep.subr.mxu0 0.0
    %99 = vmatpush1.msra.mxu0 0.0
    %100 = vmatprep.subr.mxu0 0.0
    %101 = vmatpush1.msra.mxu0 0.0
    %102 = vmatprep.subr.mxu0 0.0
    %103 = vmatpush1.msra.mxu0 0.0
    %104 = vmatprep.subr.mxu0 0.0
    %105 = vmatpush1.msra.mxu0 0.0
    %106 = vmatprep.subr.mxu0 0.0
    %107 = vmatpush1.msra.mxu0 0.0
    %108 = vmatprep.subr.mxu0 0.0
    %109 = vmatpush1.msra.mxu0 0.0
    %110 = vmatprep.subr.mxu0 0.0
    %111 = vmatpush1.msra.mxu0 0.0
    %112 = vmatprep.subr.mxu0 0.0
    %113 = vmatpush1.msra.mxu0 0.0
    %114 = vmatprep.subr.mxu0 0.0
    %115 = vmatpush1.msra.mxu0 0.0
    %116 = vmatprep.subr.mxu0 0.0
    %117 = vmatpush1.msra.mxu0 0.0
    %118 = vmatprep.subr.mxu0 0.0
    %119 = vmatpush1.msra.mxu0 0.0
    %120 = vmatprep.subr.mxu0 0.0
    %121 = vmatpush1.msra.mxu0 0.0
    %122 = vmatprep.subr.mxu0 0.0
    %123 = vmatpush1.msra.mxu0 0.0
    %124 = vmatprep.subr.mxu0 0.0
    %125 = vmatpush1.msra.mxu0 0.0
    %126 = vmatprep.subr.mxu0 0.0
    %127 = vmatpush1.msra.mxu0 0.0
    %128 = vmatprep.subr.mxu0 0.0
    %129 = vmatpush1.msra.mxu0 0.0
    %130 = vmatprep.subr.mxu0 0.0
    %131 = vmatpush1.msra.mxu0 0.0
    %132 = vmatprep.subr.mxu0 0.0
    %133 = vmatpush1.msra.mxu0 0.0
    %134 = vmatprep.subr.mxu0 0.0
    %135 = vmatpush1.msra.mxu0 0.0
    %136 = vmatprep.subr.mxu0 0.0
    %137 = vmatpush1.msra.mxu0 0.0
    %138 = vmatprep.subr.mxu0 0.0
    %139 = vmatpush1.msra.mxu0 0.0
    %140 = vmatprep.subr.mxu0 0.0
    %141 = vmatpush1.msra.mxu0 0.0
    %142 = vmatprep.subr.mxu0 0.0
    %143 = vmatpush1.msra.mxu0 0.0
    %144 = vmatprep.subr.mxu0 0.0
    %145 = vmatpush1.msra.mxu0 0.0
    %146 = vmatprep.mubr.f32.mxu0 0.0
    %147 = vmatmul.mubr.f32.gmra.mrb[0].mxu0 %v35
    %v148 = vpop.f32.mrb[0].mxu0
    %v149 = vadd.f32 0.0, %v148
    %v150 = vpop.f32.mrb[0].mxu0
    %151 = vmatprep.mubr.f32.mxu0 0.0
    %152 = vmatmul.mubr.f32.gmra.mrb[0].mxu0 %v38
    %v153 = vpop.f32.mrb[0].mxu0
    %v154 = vadd.f32 0.0, %v153
    %v155 = vpop.f32.mrb[0].mxu0
    %156 = vmatprep.mubr.f32.mxu0 0.0
    %157 = vmatmul.mubr.f32.gmra.mrb[0].mxu0 %v41
    %v158 = vpop.f32.mrb[0].mxu0
    %v159 = vadd.f32 0.0, %v158
    %v160 = vpop.f32.mrb[0].mxu0
    %161 = vmatprep.mubr.f32.mxu0 0.0
    %162 = vmatmul.mubr.f32.gmra.mrb[0].mxu0 %v44
    %v163 = vpop.f32.mrb[0].mxu0
    %v164 = vadd.f32 0.0, %v163
    %v165 = vpop.f32.mrb[0].mxu0
    %166 = vmatprep.mubr.f32.mxu0 0.0
    %167 = vmatmul.mubr.f32.gmra.mrb[0].mxu0 %v47
    %v168 = vpop.f32.mrb[0].mxu0
    %v169 = vadd.f32 0.0, %v168
    %v170 = vpop.f32.mrb[0].mxu0
    %171 = vmatprep.mubr.f32.mxu0 0.0
    %172 = vmatmul.mubr.f32.gmra.mrb[0].mxu0 %v50
    %v173 = vpop.f32.mrb[0].mxu0
    %v174 = vadd.f32 0.0, %v173
    %v175 = vpop.f32.mrb[0].mxu0
    %176 = vmatprep.mubr.f32.mxu0 0.0
    %177 = vmatmul.mubr.f32.gmra.mrb[0].mxu0 %v53
    %v178 = vpop.f32.mrb[0].mxu0
    %v179 = vadd.f32 0.0, %v178
    %v180 = vpop.f32.mrb[0].mxu0
    %181 = vmatprep.mubr.f32.mxu0 0.0
    %182 = vmatmul.mubr.f32.gmra.mrb[0].mxu0 %v56
    %v183 = vpop.f32.mrb[0].mxu0
    %v184 = vadd.f32 0.0, %v183
    %v185 = vpop.f32.mrb[0].mxu0
    %186 = vmatprep.mubr.f32.mxu0 0.0
    %187 = vmatmul.mubr.f32.gmra.mrb[0].mxu0 %v59
    %v188 = vpop.f32.mrb[0].mxu0
    %v189 = vadd.f32 0.0, %v188
    %v190 = vpop.f32.mrb[0].mxu0
    %191 = vmatprep.mubr.f32.mxu0 0.0
    %192 = vmatmul.mubr.f32.gmra.mrb[0].mxu0 %v62
    %v193 = vpop.f32.mrb[0].mxu0
    %v194 = vadd.f32 0.0, %v193
    %v195 = vpop.f32.mrb[0].mxu0
    %196 = vmatprep.mubr.f32.mxu0 0.0
    %197 = vmatmul.mubr.f32.gmra.mrb[0].mxu0 %v65
    %v198 = vpop.f32.mrb[0].mxu0
    %v199 = vadd.f32 0.0, %v198
    %v200 = vpop.f32.mrb[0].mxu0
    %201 = vmatprep.mubr.f32.mxu0 0.0
    %202 = vmatmul.mubr.f32.gmra.mrb[0].mxu0 %v68
    %v203 = vpop.f32.mrb[0].mxu0
    %v204 = vadd.f32 0.0, %v203
    %v205 = vpop.f32.mrb[0].mxu0
    %206 = vmatprep.mubr.f32.mxu0 0.0
    %207 = vmatmul.mubr.f32.gmra.mrb[0].mxu0 %v71
    %v208 = vpop.f32.mrb[0].mxu0
    %v209 = vadd.f32 0.0, %v208
    %v210 = vpop.f32.mrb[0].mxu0
    %211 = vmatprep.mubr.f32.mxu0 0.0
    %212 = vmatmul.mubr.f32.gmra.mrb[0].mxu0 %v74
    %v213 = vpop.f32.mrb[0].mxu0
    %v214 = vadd.f32 0.0, %v213
    %v215 = vpop.f32.mrb[0].mxu0
    %216 = vmatprep.mubr.f32.mxu0 0.0
    %217 = vmatmul.mubr.f32.gmra.mrb[0].mxu0 %v77
    %v218 = vpop.f32.mrb[0].mxu0
    %v219 = vadd.f32 0.0, %v218
    %v220 = vpop.f32.mrb[0].mxu0
    %221 = vmatprep.mubr.f32.mxu0 0.0
    %222 = vmatmul.mubr.f32.gmra.mrb[0].mxu0 %v80
    %v223 = vpop.f32.mrb[0].mxu0
    %v224 = vadd.f32 0.0, %v223
    %v225 = vpop.f32.mrb[0].mxu0
    %226 = vdwg.mxu0
    %v227 = vld [vmem:[%s2] sm:$0xff]
    %v228 = vld [vmem:[%s2 + $0x8] sm:$0xff]
    %v229 = vld [vmem:[%s2 + $0x10] sm:$0xff]
    %v230 = vld [vmem:[%s2 + $0x18] sm:$0xff]
    %v232 = vsel %vm33, %v227, 0
    %v235 = vsel %vm33, %v228, 0
    %v238 = vsel %vm33, %v229, 0
    %v241 = vsel %vm33, %v230, 0
    %243 = vmatprep.subr.mxu0 0.0
    %244 = vmatpush1.msra.mxu0 %v149
    %245 = vmatprep.subr.mxu0 0.0
    %246 = vmatpush1.msra.mxu0 %v154
    %247 = vmatprep.subr.mxu0 0.0
    %248 = vmatpush1.msra.mxu0 0.0
    %249 = vmatprep.subr.mxu0 0.0
    %250 = vmatpush1.msra.mxu0 0.0
    %251 = vmatprep.subr.mxu0 0.0
    %252 = vmatpush1.msra.mxu0 0.0
    %253 = vmatprep.subr.mxu0 0.0
    %254 = vmatpush1.msra.mxu0 0.0
    %255 = vmatprep.subr.mxu0 0.0
    %256 = vmatpush1.msra.mxu0 0.0
    %257 = vmatprep.subr.mxu0 0.0
    %258 = vmatpush1.msra.mxu0 0.0
    %259 = vmatprep.subr.mxu0 0.0
    %260 = vmatpush1.msra.mxu0 0.0
    %261 = vmatprep.subr.mxu0 0.0
    %262 = vmatpush1.msra.mxu0 0.0
    %263 = vmatprep.subr.mxu0 0.0
    %264 = vmatpush1.msra.mxu0 0.0
    %265 = vmatprep.subr.mxu0 0.0
    %266 = vmatpush1.msra.mxu0 0.0
    %267 = vmatprep.subr.mxu0 0.0
    %268 = vmatpush1.msra.mxu0 0.0
    %269 = vmatprep.subr.mxu0 0.0
    %270 = vmatpush1.msra.mxu0 0.0
    %271 = vmatprep.subr.mxu0 0.0
    %272 = vmatpush1.msra.mxu0 0.0
    %273 = vmatprep.subr.mxu0 0.0
    %274 = vmatpush1.msra.mxu0 0.0
    %275 = vmatprep.subr.mxu0 0.0
    %276 = vmatpush1.msra.mxu0 0.0
    %277 = vmatprep.subr.mxu0 0.0
    %278 = vmatpush1.msra.mxu0 0.0
    %279 = vmatprep.subr.mxu0 0.0
    %280 = vmatpush1.msra.mxu0 0.0
    %281 = vmatprep.subr.mxu0 0.0
    %282 = vmatpush1.msra.mxu0 0.0
    %283 = vmatprep.subr.mxu0 0.0
    %284 = vmatpush1.msra.mxu0 0.0
    %285 = vmatprep.subr.mxu0 0.0
    %286 = vmatpush1.msra.mxu0 0.0
    %287 = vmatprep.subr.mxu0 0.0
    %288 = vmatpush1.msra.mxu0 0.0
    %289 = vmatprep.subr.mxu0 0.0
    %290 = vmatpush1.msra.mxu0 0.0
    %291 = vmatprep.subr.mxu0 0.0
    %292 = vmatpush1.msra.mxu0 0.0
    %293 = vmatprep.subr.mxu0 0.0
    %294 = vmatpush1.msra.mxu0 0.0
    %295 = vmatprep.subr.mxu0 0.0
    %296 = vmatpush1.msra.mxu0 0.0
    %297 = vmatprep.subr.mxu0 0.0
    %298 = vmatpush1.msra.mxu0 0.0
    %299 = vmatprep.subr.mxu0 0.0
    %300 = vmatpush1.msra.mxu0 0.0
    %301 = vmatprep.subr.mxu0 0.0
    %302 = vmatpush1.msra.mxu0 0.0
    %303 = vmatprep.subr.mxu0 0.0
    %304 = vmatpush1.msra.mxu0 0.0
    %305 = vmatprep.subr.mxu0 0.0
    %306 = vmatpush1.msra.mxu0 0.0
    %307 = vmatprep.mubr.f32.mxu0 0.0
    %308 = vmatmul.mubr.f32.gmra.mrb[0].mxu0 %v232
    %v309 = vpop.f32.mrb[0].mxu0
    %v310 = vadd.f32 0.0, %v309
    %v311 = vpop.f32.mrb[0].mxu0
    %312 = vmatprep.mubr.f32.mxu0 0.0
    %313 = vmatmul.mubr.f32.gmra.mrb[0].mxu0 %v235
    %v314 = vpop.f32.mrb[0].mxu0
    %v315 = vadd.f32 0.0, %v314
    %v316 = vpop.f32.mrb[0].mxu0
    %317 = vmatprep.mubr.f32.mxu0 0.0
    %318 = vmatmul.mubr.f32.gmra.mrb[0].mxu0 %v238
    %v319 = vpop.f32.mrb[0].mxu0
    %v320 = vadd.f32 0.0, %v319
    %v321 = vpop.f32.mrb[0].mxu0
    %322 = vmatprep.mubr.f32.mxu0 0.0
    %323 = vmatmul.mubr.f32.gmra.mrb[0].mxu0 %v241
    %v324 = vpop.f32.mrb[0].mxu0
    %v325 = vadd.f32 0.0, %v324
    %v326 = vpop.f32.mrb[0].mxu0
    %327 = vdwg.mxu0
    %328 = vmatprep.subr.mxu0 0.0
    %329 = vmatpush1.msra.mxu0 %v159
    %330 = vmatprep.subr.mxu0 0.0
    %331 = vmatpush1.msra.mxu0 %v164
    %332 = vmatprep.subr.mxu0 0.0
    %333 = vmatpush1.msra.mxu0 0.0
    %334 = vmatprep.subr.mxu0 0.0
    %335 = vmatpush1.msra.mxu0 0.0
    %336 = vmatprep.subr.mxu0 0.0
    %337 = vmatpush1.msra.mxu0 0.0
    %338 = vmatprep.subr.mxu0 0.0
    %339 = vmatpush1.msra.mxu0 0.0
    %340 = vmatprep.subr.mxu0 0.0
    %341 = vmatpush1.msra.mxu0 0.0
    %342 = vmatprep.subr.mxu0 0.0
    %343 = vmatpush1.msra.mxu0 0.0
    %344 = vmatprep.subr.mxu0 0.0
    %345 = vmatpush1.msra.mxu0 0.0
    %346 = vmatprep.subr.mxu0 0.0
    %347 = vmatpush1.msra.mxu0 0.0
    %348 = vmatprep.subr.mxu0 0.0
    %349 = vmatpush1.msra.mxu0 0.0
    %350 = vmatprep.subr.mxu0 0.0
    %351 = vmatpush1.msra.mxu0 0.0
    %352 = vmatprep.subr.mxu0 0.0
    %353 = vmatpush1.msra.mxu0 0.0
    %354 = vmatprep.subr.mxu0 0.0
    %355 = vmatpush1.msra.mxu0 0.0
    %356 = vmatprep.subr.mxu0 0.0
    %357 = vmatpush1.msra.mxu0 0.0
    %358 = vmatprep.subr.mxu0 0.0
    %359 = vmatpush1.msra.mxu0 0.0
    %360 = vmatprep.subr.mxu0 0.0
    %361 = vmatpush1.msra.mxu0 0.0
    %362 = vmatprep.subr.mxu0 0.0
    %363 = vmatpush1.msra.mxu0 0.0
    %364 = vmatprep.subr.mxu0 0.0
    %365 = vmatpush1.msra.mxu0 0.0
    %366 = vmatprep.subr.mxu0 0.0
    %367 = vmatpush1.msra.mxu0 0.0
    %368 = vmatprep.subr.mxu0 0.0
    %369 = vmatpush1.msra.mxu0 0.0
    %370 = vmatprep.subr.mxu0 0.0
    %371 = vmatpush1.msra.mxu0 0.0
    %372 = vmatprep.subr.mxu0 0.0
    %373 = vmatpush1.msra.mxu0 0.0
    %374 = vmatprep.subr.mxu0 0.0
    %375 = vmatpush1.msra.mxu0 0.0
    %376 = vmatprep.subr.mxu0 0.0
    %377 = vmatpush1.msra.mxu0 0.0
    %378 = vmatprep.subr.mxu0 0.0
    %379 = vmatpush1.msra.mxu0 0.0
    %380 = vmatprep.subr.mxu0 0.0
    %381 = vmatpush1.msra.mxu0 0.0
    %382 = vmatprep.subr.mxu0 0.0
    %383 = vmatpush1.msra.mxu0 0.0
    %384 = vmatprep.subr.mxu0 0.0
    %385 = vmatpush1.msra.mxu0 0.0
    %386 = vmatprep.subr.mxu0 0.0
    %387 = vmatpush1.msra.mxu0 0.0
    %388 = vmatprep.subr.mxu0 0.0
    %389 = vmatpush1.msra.mxu0 0.0
    %390 = vmatprep.subr.mxu0 0.0
    %391 = vmatpush1.msra.mxu0 0.0
    %392 = vmatprep.mubr.f32.mxu0 0.0
    %393 = vmatmul.mubr.f32.gmra.mrb[0].mxu0 %v232
    %v394 = vpop.f32.mrb[0].mxu0
    %v395 = vadd.f32 0.0, %v394
    %v396 = vpop.f32.mrb[0].mxu0
    %397 = vmatprep.mubr.f32.mxu0 0.0
    %398 = vmatmul.mubr.f32.gmra.mrb[0].mxu0 %v235
    %v399 = vpop.f32.mrb[0].mxu0
    %v400 = vadd.f32 0.0, %v399
    %v401 = vpop.f32.mrb[0].mxu0
    %402 = vmatprep.mubr.f32.mxu0 0.0
    %403 = vmatmul.mubr.f32.gmra.mrb[0].mxu0 %v238
    %v404 = vpop.f32.mrb[0].mxu0
    %v405 = vadd.f32 0.0, %v404
    %v406 = vpop.f32.mrb[0].mxu0
    %407 = vmatprep.mubr.f32.mxu0 0.0
    %408 = vmatmul.mubr.f32.gmra.mrb[0].mxu0 %v241
    %v409 = vpop.f32.mrb[0].mxu0
    %v410 = vadd.f32 0.0, %v409
    %v411 = vpop.f32.mrb[0].mxu0
    %412 = vdwg.mxu0
    %413 = vmatprep.subr.mxu0 0.0
    %414 = vmatpush1.msra.mxu0 %v169
    %415 = vmatprep.subr.mxu0 0.0
    %416 = vmatpush1.msra.mxu0 %v174
    %417 = vmatprep.subr.mxu0 0.0
    %418 = vmatpush1.msra.mxu0 0.0
    %419 = vmatprep.subr.mxu0 0.0
    %420 = vmatpush1.msra.mxu0 0.0
    %421 = vmatprep.subr.mxu0 0.0
    %422 = vmatpush1.msra.mxu0 0.0
    %423 = vmatprep.subr.mxu0 0.0
    %424 = vmatpush1.msra.mxu0 0.0
    %425 = vmatprep.subr.mxu0 0.0
    %426 = vmatpush1.msra.mxu0 0.0
    %427 = vmatprep.subr.mxu0 0.0
    %428 = vmatpush1.msra.mxu0 0.0
    %429 = vmatprep.subr.mxu0 0.0
    %430 = vmatpush1.msra.mxu0 0.0
    %431 = vmatprep.subr.mxu0 0.0
    %432 = vmatpush1.msra.mxu0 0.0
    %433 = vmatprep.subr.mxu0 0.0
    %434 = vmatpush1.msra.mxu0 0.0
    %435 = vmatprep.subr.mxu0 0.0
    %436 = vmatpush1.msra.mxu0 0.0
    %437 = vmatprep.subr.mxu0 0.0
    %438 = vmatpush1.msra.mxu0 0.0
    %439 = vmatprep.subr.mxu0 0.0
    %440 = vmatpush1.msra.mxu0 0.0
    %441 = vmatprep.subr.mxu0 0.0
    %442 = vmatpush1.msra.mxu0 0.0
    %443 = vmatprep.subr.mxu0 0.0
    %444 = vmatpush1.msra.mxu0 0.0
    %445 = vmatprep.subr.mxu0 0.0
    %446 = vmatpush1.msra.mxu0 0.0
    %447 = vmatprep.subr.mxu0 0.0
    %448 = vmatpush1.msra.mxu0 0.0
    %449 = vmatprep.subr.mxu0 0.0
    %450 = vmatpush1.msra.mxu0 0.0
    %451 = vmatprep.subr.mxu0 0.0
    %452 = vmatpush1.msra.mxu0 0.0
    %453 = vmatprep.subr.mxu0 0.0
    %454 = vmatpush1.msra.mxu0 0.0
    %455 = vmatprep.subr.mxu0 0.0
    %456 = vmatpush1.msra.mxu0 0.0
    %457 = vmatprep.subr.mxu0 0.0
    %458 = vmatpush1.msra.mxu0 0.0
    %459 = vmatprep.subr.mxu0 0.0
    %460 = vmatpush1.msra.mxu0 0.0
    %461 = vmatprep.subr.mxu0 0.0
    %462 = vmatpush1.msra.mxu0 0.0
    %463 = vmatprep.subr.mxu0 0.0
    %464 = vmatpush1.msra.mxu0 0.0
    %465 = vmatprep.subr.mxu0 0.0
    %466 = vmatpush1.msra.mxu0 0.0
    %467 = vmatprep.subr.mxu0 0.0
    %468 = vmatpush1.msra.mxu0 0.0
    %469 = vmatprep.subr.mxu0 0.0
    %470 = vmatpush1.msra.mxu0 0.0
    %471 = vmatprep.subr.mxu0 0.0
    %472 = vmatpush1.msra.mxu0 0.0
    %473 = vmatprep.subr.mxu0 0.0
    %474 = vmatpush1.msra.mxu0 0.0
    %475 = vmatprep.subr.mxu0 0.0
    %476 = vmatpush1.msra.mxu0 0.0
    %477 = vmatprep.mubr.f32.mxu0 0.0
    %478 = vmatmul.mubr.f32.gmra.mrb[0].mxu0 %v232
    %v479 = vpop.f32.mrb[0].mxu0
    %v480 = vadd.f32 0.0, %v479
    %v481 = vpop.f32.mrb[0].mxu0
    %482 = vmatprep.mubr.f32.mxu0 0.0
    %483 = vmatmul.mubr.f32.gmra.mrb[0].mxu0 %v235
    %v484 = vpop.f32.mrb[0].mxu0
    %v485 = vadd.f32 0.0, %v484
    %v486 = vpop.f32.mrb[0].mxu0
    %487 = vmatprep.mubr.f32.mxu0 0.0
    %488 = vmatmul.mubr.f32.gmra.mrb[0].mxu0 %v238
    %v489 = vpop.f32.mrb[0].mxu0
    %v490 = vadd.f32 0.0, %v489
    %v491 = vpop.f32.mrb[0].mxu0
    %492 = vmatprep.mubr.f32.mxu0 0.0
    %493 = vmatmul.mubr.f32.gmra.mrb[0].mxu0 %v241
    %v494 = vpop.f32.mrb[0].mxu0
    %v495 = vadd.f32 0.0, %v494
    %v496 = vpop.f32.mrb[0].mxu0
    %497 = vdwg.mxu0
    %498 = vmatprep.subr.mxu0 0.0
    %499 = vmatpush1.msra.mxu0 %v179
    %500 = vmatprep.subr.mxu0 0.0
    %501 = vmatpush1.msra.mxu0 %v184
    %502 = vmatprep.subr.mxu0 0.0
    %503 = vmatpush1.msra.mxu0 0.0
    %504 = vmatprep.subr.mxu0 0.0
    %505 = vmatpush1.msra.mxu0 0.0
    %506 = vmatprep.subr.mxu0 0.0
    %507 = vmatpush1.msra.mxu0 0.0
    %508 = vmatprep.subr.mxu0 0.0
    %509 = vmatpush1.msra.mxu0 0.0
    %510 = vmatprep.subr.mxu0 0.0
    %511 = vmatpush1.msra.mxu0 0.0
    %512 = vmatprep.subr.mxu0 0.0
    %513 = vmatpush1.msra.mxu0 0.0
    %514 = vmatprep.subr.mxu0 0.0
    %515 = vmatpush1.msra.mxu0 0.0
    %516 = vmatprep.subr.mxu0 0.0
    %517 = vmatpush1.msra.mxu0 0.0
    %518 = vmatprep.subr.mxu0 0.0
    %519 = vmatpush1.msra.mxu0 0.0
    %520 = vmatprep.subr.mxu0 0.0
    %521 = vmatpush1.msra.mxu0 0.0
    %522 = vmatprep.subr.mxu0 0.0
    %523 = vmatpush1.msra.mxu0 0.0
    %524 = vmatprep.subr.mxu0 0.0
    %525 = vmatpush1.msra.mxu0 0.0
    %526 = vmatprep.subr.mxu0 0.0
    %527 = vmatpush1.msra.mxu0 0.0
    %528 = vmatprep.subr.mxu0 0.0
    %529 = vmatpush1.msra.mxu0 0.0
    %530 = vmatprep.subr.mxu0 0.0
    %531 = vmatpush1.msra.mxu0 0.0
    %532 = vmatprep.subr.mxu0 0.0
    %533 = vmatpush1.msra.mxu0 0.0
    %534 = vmatprep.subr.mxu0 0.0
    %535 = vmatpush1.msra.mxu0 0.0
    %536 = vmatprep.subr.mxu0 0.0
    %537 = vmatpush1.msra.mxu0 0.0
    %538 = vmatprep.subr.mxu0 0.0
    %539 = vmatpush1.msra.mxu0 0.0
    %540 = vmatprep.subr.mxu0 0.0
    %541 = vmatpush1.msra.mxu0 0.0
    %542 = vmatprep.subr.mxu0 0.0
    %543 = vmatpush1.msra.mxu0 0.0
    %544 = vmatprep.subr.mxu0 0.0
    %545 = vmatpush1.msra.mxu0 0.0
    %546 = vmatprep.subr.mxu0 0.0
    %547 = vmatpush1.msra.mxu0 0.0
    %548 = vmatprep.subr.mxu0 0.0
    %549 = vmatpush1.msra.mxu0 0.0
    %550 = vmatprep.subr.mxu0 0.0
    %551 = vmatpush1.msra.mxu0 0.0
    %552 = vmatprep.subr.mxu0 0.0
    %553 = vmatpush1.msra.mxu0 0.0
    %554 = vmatprep.subr.mxu0 0.0
    %555 = vmatpush1.msra.mxu0 0.0
    %556 = vmatprep.subr.mxu0 0.0
    %557 = vmatpush1.msra.mxu0 0.0
    %558 = vmatprep.subr.mxu0 0.0
    %559 = vmatpush1.msra.mxu0 0.0
    %560 = vmatprep.subr.mxu0 0.0
    %561 = vmatpush1.msra.mxu0 0.0
    %562 = vmatprep.mubr.f32.mxu0 0.0
    %563 = vmatmul.mubr.f32.gmra.mrb[0].mxu0 %v232
    %v564 = vpop.f32.mrb[0].mxu0
    %v565 = vadd.f32 0.0, %v564
    %v566 = vpop.f32.mrb[0].mxu0
    %567 = vmatprep.mubr.f32.mxu0 0.0
    %568 = vmatmul.mubr.f32.gmra.mrb[0].mxu0 %v235
    %v569 = vpop.f32.mrb[0].mxu0
    %v570 = vadd.f32 0.0, %v569
    %v571 = vpop.f32.mrb[0].mxu0
    %572 = vmatprep.mubr.f32.mxu0 0.0
    %573 = vmatmul.mubr.f32.gmra.mrb[0].mxu0 %v238
    %v574 = vpop.f32.mrb[0].mxu0
    %v575 = vadd.f32 0.0, %v574
    %v576 = vpop.f32.mrb[0].mxu0
    %577 = vmatprep.mubr.f32.mxu0 0.0
    %578 = vmatmul.mubr.f32.gmra.mrb[0].mxu0 %v241
    %v579 = vpop.f32.mrb[0].mxu0
    %v580 = vadd.f32 0.0, %v579
    %v581 = vpop.f32.mrb[0].mxu0
    %582 = vdwg.mxu0
    %583 = vmatprep.subr.mxu0 0.0
    %584 = vmatpush1.msra.mxu0 %v189
    %585 = vmatprep.subr.mxu0 0.0
    %586 = vmatpush1.msra.mxu0 %v194
    %587 = vmatprep.subr.mxu0 0.0
    %588 = vmatpush1.msra.mxu0 0.0
    %589 = vmatprep.subr.mxu0 0.0
    %590 = vmatpush1.msra.mxu0 0.0
    %591 = vmatprep.subr.mxu0 0.0
    %592 = vmatpush1.msra.mxu0 0.0
    %593 = vmatprep.subr.mxu0 0.0
    %594 = vmatpush1.msra.mxu0 0.0
    %595 = vmatprep.subr.mxu0 0.0
    %596 = vmatpush1.msra.mxu0 0.0
    %597 = vmatprep.subr.mxu0 0.0
    %598 = vmatpush1.msra.mxu0 0.0
    %599 = vmatprep.subr.mxu0 0.0
    %600 = vmatpush1.msra.mxu0 0.0
    %601 = vmatprep.subr.mxu0 0.0
    %602 = vmatpush1.msra.mxu0 0.0
    %603 = vmatprep.subr.mxu0 0.0
    %604 = vmatpush1.msra.mxu0 0.0
    %605 = vmatprep.subr.mxu0 0.0
    %606 = vmatpush1.msra.mxu0 0.0
    %607 = vmatprep.subr.mxu0 0.0
    %608 = vmatpush1.msra.mxu0 0.0
    %609 = vmatprep.subr.mxu0 0.0
    %610 = vmatpush1.msra.mxu0 0.0
    %611 = vmatprep.subr.mxu0 0.0
    %612 = vmatpush1.msra.mxu0 0.0
    %613 = vmatprep.subr.mxu0 0.0
    %614 = vmatpush1.msra.mxu0 0.0
    %615 = vmatprep.subr.mxu0 0.0
    %616 = vmatpush1.msra.mxu0 0.0
    %617 = vmatprep.subr.mxu0 0.0
    %618 = vmatpush1.msra.mxu0 0.0
    %619 = vmatprep.subr.mxu0 0.0
    %620 = vmatpush1.msra.mxu0 0.0
    %621 = vmatprep.subr.mxu0 0.0
    %622 = vmatpush1.msra.mxu0 0.0
    %623 = vmatprep.subr.mxu0 0.0
    %624 = vmatpush1.msra.mxu0 0.0
    %625 = vmatprep.subr.mxu0 0.0
    %626 = vmatpush1.msra.mxu0 0.0
    %627 = vmatprep.subr.mxu0 0.0
    %628 = vmatpush1.msra.mxu0 0.0
    %629 = vmatprep.subr.mxu0 0.0
    %630 = vmatpush1.msra.mxu0 0.0
    %631 = vmatprep.subr.mxu0 0.0
    %632 = vmatpush1.msra.mxu0 0.0
    %633 = vmatprep.subr.mxu0 0.0
    %634 = vmatpush1.msra.mxu0 0.0
    %635 = vmatprep.subr.mxu0 0.0
    %636 = vmatpush1.msra.mxu0 0.0
    %637 = vmatprep.subr.mxu0 0.0
    %638 = vmatpush1.msra.mxu0 0.0
    %639 = vmatprep.subr.mxu0 0.0
    %640 = vmatpush1.msra.mxu0 0.0
    %641 = vmatprep.subr.mxu0 0.0
    %642 = vmatpush1.msra.mxu0 0.0
    %643 = vmatprep.subr.mxu0 0.0
    %644 = vmatpush1.msra.mxu0 0.0
    %645 = vmatprep.subr.mxu0 0.0
    %646 = vmatpush1.msra.mxu0 0.0
    %647 = vmatprep.mubr.f32.mxu0 0.0
    %648 = vmatmul.mubr.f32.gmra.mrb[0].mxu0 %v232
    %v649 = vpop.f32.mrb[0].mxu0
    %v650 = vadd.f32 0.0, %v649
    %v651 = vpop.f32.mrb[0].mxu0
    %652 = vmatprep.mubr.f32.mxu0 0.0
    %653 = vmatmul.mubr.f32.gmra.mrb[0].mxu0 %v235
    %v654 = vpop.f32.mrb[0].mxu0
    %v655 = vadd.f32 0.0, %v654
    %v656 = vpop.f32.mrb[0].mxu0
    %657 = vmatprep.mubr.f32.mxu0 0.0
    %658 = vmatmul.mubr.f32.gmra.mrb[0].mxu0 %v238
    %v659 = vpop.f32.mrb[0].mxu0
    %v660 = vadd.f32 0.0, %v659
    %v661 = vpop.f32.mrb[0].mxu0
    %662 = vmatprep.mubr.f32.mxu0 0.0
    %663 = vmatmul.mubr.f32.gmra.mrb[0].mxu0 %v241
    %v664 = vpop.f32.mrb[0].mxu0
    %v665 = vadd.f32 0.0, %v664
    %v666 = vpop.f32.mrb[0].mxu0
    %667 = vdwg.mxu0
    %668 = vmatprep.subr.mxu0 0.0
    %669 = vmatpush1.msra.mxu0 %v199
    %670 = vmatprep.subr.mxu0 0.0
    %671 = vmatpush1.msra.mxu0 %v204
    %672 = vmatprep.subr.mxu0 0.0
    %673 = vmatpush1.msra.mxu0 0.0
    %674 = vmatprep.subr.mxu0 0.0
    %675 = vmatpush1.msra.mxu0 0.0
    %676 = vmatprep.subr.mxu0 0.0
    %677 = vmatpush1.msra.mxu0 0.0
    %678 = vmatprep.subr.mxu0 0.0
    %679 = vmatpush1.msra.mxu0 0.0
    %680 = vmatprep.subr.mxu0 0.0
    %681 = vmatpush1.msra.mxu0 0.0
    %682 = vmatprep.subr.mxu0 0.0
    %683 = vmatpush1.msra.mxu0 0.0
    %684 = vmatprep.subr.mxu0 0.0
    %685 = vmatpush1.msra.mxu0 0.0
    %686 = vmatprep.subr.mxu0 0.0
    %687 = vmatpush1.msra.mxu0 0.0
    %688 = vmatprep.subr.mxu0 0.0
    %689 = vmatpush1.msra.mxu0 0.0
    %690 = vmatprep.subr.mxu0 0.0
    %691 = vmatpush1.msra.mxu0 0.0
    %692 = vmatprep.subr.mxu0 0.0
    %693 = vmatpush1.msra.mxu0 0.0
    %694 = vmatprep.subr.mxu0 0.0
    %695 = vmatpush1.msra.mxu0 0.0
    %696 = vmatprep.subr.mxu0 0.0
    %697 = vmatpush1.msra.mxu0 0.0
    %698 = vmatprep.subr.mxu0 0.0
    %699 = vmatpush1.msra.mxu0 0.0
    %700 = vmatprep.subr.mxu0 0.0
    %701 = vmatpush1.msra.mxu0 0.0
    %702 = vmatprep.subr.mxu0 0.0
    %703 = vmatpush1.msra.mxu0 0.0
    %704 = vmatprep.subr.mxu0 0.0
    %705 = vmatpush1.msra.mxu0 0.0
    %706 = vmatprep.subr.mxu0 0.0
    %707 = vmatpush1.msra.mxu0 0.0
    %708 = vmatprep.subr.mxu0 0.0
    %709 = vmatpush1.msra.mxu0 0.0
    %710 = vmatprep.subr.mxu0 0.0
    %711 = vmatpush1.msra.mxu0 0.0
    %712 = vmatprep.subr.mxu0 0.0
    %713 = vmatpush1.msra.mxu0 0.0
    %714 = vmatprep.subr.mxu0 0.0
    %715 = vmatpush1.msra.mxu0 0.0
    %716 = vmatprep.subr.mxu0 0.0
    %717 = vmatpush1.msra.mxu0 0.0
    %718 = vmatprep.subr.mxu0 0.0
    %719 = vmatpush1.msra.mxu0 0.0
    %720 = vmatprep.subr.mxu0 0.0
    %721 = vmatpush1.msra.mxu0 0.0
    %722 = vmatprep.subr.mxu0 0.0
    %723 = vmatpush1.msra.mxu0 0.0
    %724 = vmatprep.subr.mxu0 0.0
    %725 = vmatpush1.msra.mxu0 0.0
    %726 = vmatprep.subr.mxu0 0.0
    %727 = vmatpush1.msra.mxu0 0.0
    %728 = vmatprep.subr.mxu0 0.0
    %729 = vmatpush1.msra.mxu0 0.0
    %730 = vmatprep.subr.mxu0 0.0
    %731 = vmatpush1.msra.mxu0 0.0
    %732 = vmatprep.mubr.f32.mxu0 0.0
    %733 = vmatmul.mubr.f32.gmra.mrb[0].mxu0 %v232
    %v734 = vpop.f32.mrb[0].mxu0
    %v735 = vadd.f32 0.0, %v734
    %v736 = vpop.f32.mrb[0].mxu0
    %737 = vmatprep.mubr.f32.mxu0 0.0
    %738 = vmatmul.mubr.f32.gmra.mrb[0].mxu0 %v235
    %v739 = vpop.f32.mrb[0].mxu0
    %v740 = vadd.f32 0.0, %v739
    %v741 = vpop.f32.mrb[0].mxu0
    %742 = vmatprep.mubr.f32.mxu0 0.0
    %743 = vmatmul.mubr.f32.gmra.mrb[0].mxu0 %v238
    %v744 = vpop.f32.mrb[0].mxu0
    %v745 = vadd.f32 0.0, %v744
    %v746 = vpop.f32.mrb[0].mxu0
    %747 = vmatprep.mubr.f32.mxu0 0.0
    %748 = vmatmul.mubr.f32.gmra.mrb[0].mxu0 %v241
    %v749 = vpop.f32.mrb[0].mxu0
    %v750 = vadd.f32 0.0, %v749
    %v751 = vpop.f32.mrb[0].mxu0
    %752 = vdwg.mxu0
    %753 = vmatprep.subr.mxu0 0.0
    %754 = vmatpush1.msra.mxu0 %v209
    %755 = vmatprep.subr.mxu0 0.0
    %756 = vmatpush1.msra.mxu0 %v214
    %757 = vmatprep.subr.mxu0 0.0
    %758 = vmatpush1.msra.mxu0 0.0
    %759 = vmatprep.subr.mxu0 0.0
    %760 = vmatpush1.msra.mxu0 0.0
    %761 = vmatprep.subr.mxu0 0.0
    %762 = vmatpush1.msra.mxu0 0.0
    %763 = vmatprep.subr.mxu0 0.0
    %764 = vmatpush1.msra.mxu0 0.0
    %765 = vmatprep.subr.mxu0 0.0
    %766 = vmatpush1.msra.mxu0 0.0
    %767 = vmatprep.subr.mxu0 0.0
    %768 = vmatpush1.msra.mxu0 0.0
    %769 = vmatprep.subr.mxu0 0.0
    %770 = vmatpush1.msra.mxu0 0.0
    %771 = vmatprep.subr.mxu0 0.0
    %772 = vmatpush1.msra.mxu0 0.0
    %773 = vmatprep.subr.mxu0 0.0
    %774 = vmatpush1.msra.mxu0 0.0
    %775 = vmatprep.subr.mxu0 0.0
    %776 = vmatpush1.msra.mxu0 0.0
    %777 = vmatprep.subr.mxu0 0.0
    %778 = vmatpush1.msra.mxu0 0.0
    %779 = vmatprep.subr.mxu0 0.0
    %780 = vmatpush1.msra.mxu0 0.0
    %781 = vmatprep.subr.mxu0 0.0
    %782 = vmatpush1.msra.mxu0 0.0
    %783 = vmatprep.subr.mxu0 0.0
    %784 = vmatpush1.msra.mxu0 0.0
    %785 = vmatprep.subr.mxu0 0.0
    %786 = vmatpush1.msra.mxu0 0.0
    %787 = vmatprep.subr.mxu0 0.0
    %788 = vmatpush1.msra.mxu0 0.0
    %789 = vmatprep.subr.mxu0 0.0
    %790 = vmatpush1.msra.mxu0 0.0
    %791 = vmatprep.subr.mxu0 0.0
    %792 = vmatpush1.msra.mxu0 0.0
    %793 = vmatprep.subr.mxu0 0.0
    %794 = vmatpush1.msra.mxu0 0.0
    %795 = vmatprep.subr.mxu0 0.0
    %796 = vmatpush1.msra.mxu0 0.0
    %797 = vmatprep.subr.mxu0 0.0
    %798 = vmatpush1.msra.mxu0 0.0
    %799 = vmatprep.subr.mxu0 0.0
    %800 = vmatpush1.msra.mxu0 0.0
    %801 = vmatprep.subr.mxu0 0.0
    %802 = vmatpush1.msra.mxu0 0.0
    %803 = vmatprep.subr.mxu0 0.0
    %804 = vmatpush1.msra.mxu0 0.0
    %805 = vmatprep.subr.mxu0 0.0
    %806 = vmatpush1.msra.mxu0 0.0
    %807 = vmatprep.subr.mxu0 0.0
    %808 = vmatpush1.msra.mxu0 0.0
    %809 = vmatprep.subr.mxu0 0.0
    %810 = vmatpush1.msra.mxu0 0.0
    %811 = vmatprep.subr.mxu0 0.0
    %812 = vmatpush1.msra.mxu0 0.0
    %813 = vmatprep.subr.mxu0 0.0
    %814 = vmatpush1.msra.mxu0 0.0
    %815 = vmatprep.subr.mxu0 0.0
    %816 = vmatpush1.msra.mxu0 0.0
    %817 = vmatprep.mubr.f32.mxu0 0.0
    %818 = vmatmul.mubr.f32.gmra.mrb[0].mxu0 %v232
    %v819 = vpop.f32.mrb[0].mxu0
    %v820 = vadd.f32 0.0, %v819
    %v821 = vpop.f32.mrb[0].mxu0
    %822 = vmatprep.mubr.f32.mxu0 0.0
    %823 = vmatmul.mubr.f32.gmra.mrb[0].mxu0 %v235
    %v824 = vpop.f32.mrb[0].mxu0
    %v825 = vadd.f32 0.0, %v824
    %v826 = vpop.f32.mrb[0].mxu0
    %827 = vmatprep.mubr.f32.mxu0 0.0
    %828 = vmatmul.mubr.f32.gmra.mrb[0].mxu0 %v238
    %v829 = vpop.f32.mrb[0].mxu0
    %v830 = vadd.f32 0.0, %v829
    %v831 = vpop.f32.mrb[0].mxu0
    %832 = vmatprep.mubr.f32.mxu0 0.0
    %833 = vmatmul.mubr.f32.gmra.mrb[0].mxu0 %v241
    %v834 = vpop.f32.mrb[0].mxu0
    %v835 = vadd.f32 0.0, %v834
    %v836 = vpop.f32.mrb[0].mxu0
    %837 = vdwg.mxu0
    %838 = vmatprep.subr.mxu0 0.0
    %839 = vmatpush1.msra.mxu0 %v219
    %840 = vmatprep.subr.mxu0 0.0
    %841 = vmatpush1.msra.mxu0 %v224
    %842 = vmatprep.subr.mxu0 0.0
    %843 = vmatpush1.msra.mxu0 0.0
    %844 = vmatprep.subr.mxu0 0.0
    %845 = vmatpush1.msra.mxu0 0.0
    %846 = vmatprep.subr.mxu0 0.0
    %847 = vmatpush1.msra.mxu0 0.0
    %848 = vmatprep.subr.mxu0 0.0
    %849 = vmatpush1.msra.mxu0 0.0
    %850 = vmatprep.subr.mxu0 0.0
    %851 = vmatpush1.msra.mxu0 0.0
    %852 = vmatprep.subr.mxu0 0.0
    %853 = vmatpush1.msra.mxu0 0.0
    %854 = vmatprep.subr.mxu0 0.0
    %855 = vmatpush1.msra.mxu0 0.0
    %856 = vmatprep.subr.mxu0 0.0
    %857 = vmatpush1.msra.mxu0 0.0
    %858 = vmatprep.subr.mxu0 0.0
    %859 = vmatpush1.msra.mxu0 0.0
    %860 = vmatprep.subr.mxu0 0.0
    %861 = vmatpush1.msra.mxu0 0.0
    %862 = vmatprep.subr.mxu0 0.0
    %863 = vmatpush1.msra.mxu0 0.0
    %864 = vmatprep.subr.mxu0 0.0
    %865 = vmatpush1.msra.mxu0 0.0
    %866 = vmatprep.subr.mxu0 0.0
    %867 = vmatpush1.msra.mxu0 0.0
    %868 = vmatprep.subr.mxu0 0.0
    %869 = vmatpush1.msra.mxu0 0.0
    %870 = vmatprep.subr.mxu0 0.0
    %871 = vmatpush1.msra.mxu0 0.0
    %872 = vmatprep.subr.mxu0 0.0
    %873 = vmatpush1.msra.mxu0 0.0
    %874 = vmatprep.subr.mxu0 0.0
    %875 = vmatpush1.msra.mxu0 0.0
    %876 = vmatprep.subr.mxu0 0.0
    %877 = vmatpush1.msra.mxu0 0.0
    %878 = vmatprep.subr.mxu0 0.0
    %879 = vmatpush1.msra.mxu0 0.0
    %880 = vmatprep.subr.mxu0 0.0
    %881 = vmatpush1.msra.mxu0 0.0
    %882 = vmatprep.subr.mxu0 0.0
    %883 = vmatpush1.msra.mxu0 0.0
    %884 = vmatprep.subr.mxu0 0.0
    %885 = vmatpush1.msra.mxu0 0.0
    %886 = vmatprep.subr.mxu0 0.0
    %887 = vmatpush1.msra.mxu0 0.0
    %888 = vmatprep.subr.mxu0 0.0
    %889 = vmatpush1.msra.mxu0 0.0
    %890 = vmatprep.subr.mxu0 0.0
    %891 = vmatpush1.msra.mxu0 0.0
    %892 = vmatprep.subr.mxu0 0.0
    %893 = vmatpush1.msra.mxu0 0.0
    %894 = vmatprep.subr.mxu0 0.0
    %895 = vmatpush1.msra.mxu0 0.0
    %896 = vmatprep.subr.mxu0 0.0
    %897 = vmatpush1.msra.mxu0 0.0
    %898 = vmatprep.subr.mxu0 0.0
    %899 = vmatpush1.msra.mxu0 0.0
    %900 = vmatprep.subr.mxu0 0.0
    %901 = vmatpush1.msra.mxu0 0.0
    %902 = vmatprep.mubr.f32.mxu0 0.0
    %903 = vmatmul.mubr.f32.gmra.mrb[0].mxu0 %v232
    %v904 = vpop.f32.mrb[0].mxu0
    %v905 = vadd.f32 0.0, %v904
    %v906 = vpop.f32.mrb[0].mxu0
    %907 = vmatprep.mubr.f32.mxu0 0.0
    %908 = vmatmul.mubr.f32.gmra.mrb[0].mxu0 %v235
    %v909 = vpop.f32.mrb[0].mxu0
    %v910 = vadd.f32 0.0, %v909
    %v911 = vpop.f32.mrb[0].mxu0
    %912 = vmatprep.mubr.f32.mxu0 0.0
    %913 = vmatmul.mubr.f32.gmra.mrb[0].mxu0 %v238
    %v914 = vpop.f32.mrb[0].mxu0
    %v915 = vadd.f32 0.0, %v914
    %v916 = vpop.f32.mrb[0].mxu0
    %917 = vmatprep.mubr.f32.mxu0 0.0
    %918 = vmatmul.mubr.f32.gmra.mrb[0].mxu0 %v241
    %v919 = vpop.f32.mrb[0].mxu0
    %v920 = vadd.f32 0.0, %v919
    %v921 = vpop.f32.mrb[0].mxu0
    %922 = vdwg.mxu0
    %vm923 = vcmask 261120
    %924 = vst.msk [vmem:[#allocation2] sm:$0xff] %vm923, %v310
    %925 = vst.msk [vmem:[#allocation2 + $0x8] sm:$0xff] %vm923, %v315
    %926 = vst.msk [vmem:[#allocation2 + $0x10] sm:$0xff] %vm923, %v320
    %927 = vst.msk [vmem:[#allocation2 + $0x18] sm:$0xff] %vm923, %v325
    %928 = vst.msk [vmem:[#allocation2 + $0x20] sm:$0xff] %vm923, %v395
    %929 = vst.msk [vmem:[#allocation2 + $0x28] sm:$0xff] %vm923, %v400
    %930 = vst.msk [vmem:[#allocation2 + $0x30] sm:$0xff] %vm923, %v405
    %931 = vst.msk [vmem:[#allocation2 + $0x38] sm:$0xff] %vm923, %v410
    %932 = vst.msk [vmem:[#allocation2 + $0x40] sm:$0xff] %vm923, %v480
    %933 = vst.msk [vmem:[#allocation2 + $0x48] sm:$0xff] %vm923, %v485
    %934 = vst.msk [vmem:[#allocation2 + $0x50] sm:$0xff] %vm923, %v490
    %935 = vst.msk [vmem:[#allocation2 + $0x58] sm:$0xff] %vm923, %v495
    %936 = vst.msk [vmem:[#allocation2 + $0x60] sm:$0xff] %vm923, %v565
    %937 = vst.msk [vmem:[#allocation2 + $0x68] sm:$0xff] %vm923, %v570
    %938 = vst.msk [vmem:[#allocation2 + $0x70] sm:$0xff] %vm923, %v575
    %939 = vst.msk [vmem:[#allocation2 + $0x78] sm:$0xff] %vm923, %v580
    %940 = vst.msk [vmem:[#allocation2 + $0x80] sm:$0xff] %vm923, %v650
    %941 = vst.msk [vmem:[#allocation2 + $0x88] sm:$0xff] %vm923, %v655
    %942 = vst.msk [vmem:[#allocation2 + $0x90] sm:$0xff] %vm923, %v660
    %943 = vst.msk [vmem:[#allocation2 + $0x98] sm:$0xff] %vm923, %v665
    %944 = vst.msk [vmem:[#allocation2 + $0xa0] sm:$0xff] %vm923, %v735
    %945 = vst.msk [vmem:[#allocation2 + $0xa8] sm:$0xff] %vm923, %v740
    %946 = vst.msk [vmem:[#allocation2 + $0xb0] sm:$0xff] %vm923, %v745
    %947 = vst.msk [vmem:[#allocation2 + $0xb8] sm:$0xff] %vm923, %v750
    %948 = vst.msk [vmem:[#allocation2 + $0xc0] sm:$0xff] %vm923, %v820
    %949 = vst.msk [vmem:[#allocation2 + $0xc8] sm:$0xff] %vm923, %v825
    %950 = vst.msk [vmem:[#allocation2 + $0xd0] sm:$0xff] %vm923, %v830
    %951 = vst.msk [vmem:[#allocation2 + $0xd8] sm:$0xff] %vm923, %v835
    %952 = vst.msk [vmem:[#allocation2 + $0xe0] sm:$0xff] %vm923, %v905
    %953 = vst.msk [vmem:[#allocation2 + $0xe8] sm:$0xff] %vm923, %v910
    %954 = vst.msk [vmem:[#allocation2 + $0xf0] sm:$0xff] %vm923, %v915
    %955 = vst.msk [vmem:[#allocation2 + $0xf8] sm:$0xff] %vm923, %v920
    // Predicated region
    $region14: #{tpu_custom_call.1} parent=1 // pred_check
      _
    $region15: #{tpu_custom_call.1} parent=1 // pred_check_branch
      %957 = sbr.rel (0) target = $region17
    $region16: #{tpu_custom_call.1} parent=1 // pred_region
      %s959 = ssub.s32 4096, 4096
      %960 = vsyncadd [#allocation3], %s959
      %s961 = sshll.u32 [#allocation2], 4
      %s962 = int_to_ptr.vmem [resolvable:$true] %s961
      %967 = dma.vmem_to_hbm [thread:$0]  %s962, 4096, %s3, [#allocation3], 128, 128, 8
    $region17: #{tpu_custom_call.1} parent=1 // pred_fallthru
      _
    // Predicated region
    $region18: #{tpu_custom_call.1} parent=1 // pred_check
      _
    $region19: #{tpu_custom_call.1} parent=1 // pred_check_branch
      %969 = sbr.rel (0) target = $region21
    $region20: #{tpu_custom_call.1} parent=1 // pred_region
      %970 = dma.done [#allocation3], 4096
    $region21: #{tpu_custom_call.1} parent=1 // pred_fallthru
      _
    %971 = vsyncpa [#allocation3], 1

</llo_original>
